<compile_context>
chip_gen: v5e
topology: v5e:2x2
jax: 0.10.0
libtpu: 0.0.40
codegen_flags: <defaults>
</compile_context>

<pallas_src>
import jax
import jax.numpy as jnp
from jax.experimental import pallas as pl
from jax.experimental.pallas import tpu as pltpu


# --------------------------------------------------------------------------- #
# Kernel
# --------------------------------------------------------------------------- #
def _actor_critic_kernel(x_ref, act_ref,
                         w1_ref, b1_ref, w2_ref, b2_ref, w3_ref, b3_ref,
                         out_ref):
    """One batch tile. All activations are (features, TILE_B): batch on lanes."""
    A = w3_ref.shape[0] - 1            # action_dim (fused row A is the value head)
    TB = x_ref.shape[1]                # batch tile width (lanes)

    x = x_ref[...]                                                      # (S, TB)

    # fused actor+critic hidden layers -> (2H, TB)
    h1 = jnp.tanh(jnp.dot(w1_ref[...], x,
                          preferred_element_type=jnp.float32) + b1_ref[...])
    h2 = jnp.tanh(jnp.dot(w2_ref[...], h1,
                          preferred_element_type=jnp.float32) + b2_ref[...])

    # fused output layer: rows 0..A-1 = actor logits, row A = critic value
    y3 = jnp.dot(w3_ref[...], h2,
                 preferred_element_type=jnp.float32) + b3_ref[...]      # (A+1, TB)
    logits = y3[:A, :]                                                  # (A, TB)
    value = y3[A:A + 1, :]                                              # (1, TB)

    # numerically-stable softmax over the action (sublane) axis
    m = jnp.max(logits, axis=0, keepdims=True)                          # (1, TB)
    z = logits - m
    e = jnp.exp(z)
    s = jnp.sum(e, axis=0, keepdims=True)                               # (1, TB)
    # NOTE: approx=True (EUP vrcp) would be ~free but adds ~1e-5-level error;
    # kept exact so the 1e-5 reference check in __main__ stays meaningful.
    probs = e * pl.reciprocal(s, approx=False)                          # (A, TB)
    log_probs = z - jnp.log(s)                                          # (A, TB)

    # Categorical.log_prob(action) via one-hot over the sublane (action) axis.
    # (Out-of-range actions silently yield logp = 0; callers must pass actions
    #  in [0, action_dim), same contract as torch.distributions.Categorical.)
    act = act_ref[...]                                                  # (1, TB) i32
    row = jax.lax.broadcasted_iota(jnp.int32, (A, TB), 0)
    onehot = (row == act).astype(jnp.float32)
    logp = jnp.sum(onehot * log_probs, axis=0, keepdims=True)           # (1, TB)

    # Categorical.entropy() = -sum p log p
    ent = -jnp.sum(probs * log_probs, axis=0, keepdims=True)            # (1, TB)

    # single lane-dense packed store: rows = [logprob, value, entropy]
    out_ref[...] = jnp.concatenate([logp, value, ent], axis=0)          # (3, TB)


# --------------------------------------------------------------------------- #
# Wrapper
# --------------------------------------------------------------------------- #
def actor_critic_evaluate(state, action, packed_params, *, tile_b=128):
    """Pallas implementation of ActorCritic.evaluate(state, action).

    state : (B, state_dim) f32
    action: (B,) integer actions in [0, action_dim)
    packed_params: output of pack_params()
    returns (action_logprobs (B,), state_value (B,), dist_entropy (B,))
    """
    w1, b1, w2, b2, w3, b3 = packed_params
    B, S = state.shape
    H2 = w1.shape[0]                   # 2 * n_latent_var
    A = w3.shape[0] - 1                # action_dim

    n_tiles = pl.cdiv(B, tile_b)
    b_pad = n_tiles * tile_b

    # batch-on-lanes layout (+ pad batch to a TILE_B multiple).  Pure layout
    # plumbing; padded columns are zeros with action 0 and are sliced away.
    x_t = jnp.pad(state.astype(jnp.float32).T, ((0, 0), (0, b_pad - B)))
    a_t = jnp.pad(action.astype(jnp.int32)[None, :], ((0, 0), (0, b_pad - B)))

    batch_map = lambda i: (0, i)       # tiled along the lane/batch axis
    const_map = lambda i: (0, 0)       # parameters: VMEM-resident, no re-DMA

    param_bytes = 4 * sum(int(p.size) for p in (w1, b1, w2, b2, w3, b3))
    cost = pl.CostEstimate(
        flops=2 * b_pad * (S * H2 + H2 * H2 + H2 * (A + 1)),
        transcendentals=b_pad * (2 * H2 + A + 2),     # tanh + exp + log + recip
        bytes_accessed=4 * b_pad * (S + 1 + 3) + param_bytes,
    )

    out = pl.pallas_call(
        _actor_critic_kernel,
        out_shape=jax.ShapeDtypeStruct((3, b_pad), jnp.float32),
        grid=(n_tiles,),
        in_specs=[
            pl.BlockSpec((S, tile_b), batch_map),      # state (transposed)
            pl.BlockSpec((1, tile_b), batch_map),      # actions
            pl.BlockSpec(w1.shape, const_map),
            pl.BlockSpec(b1.shape, const_map),
            pl.BlockSpec(w2.shape, const_map),
            pl.BlockSpec(b2.shape, const_map),
            pl.BlockSpec(w3.shape, const_map),
            pl.BlockSpec(b3.shape, const_map),
        ],
        out_specs=pl.BlockSpec((3, tile_b), batch_map),
        compiler_params=pltpu.CompilerParams(
            dimension_semantics=("parallel",),          # v7x: shard tiles on 2 TCs
            vmem_limit_bytes=32 * 1024 * 1024,          # explicit budget (v7x: 64 MiB phys)
        ),
        cost_estimate=cost,
    )(x_t, a_t, w1, b1, w2, b2, w3, b3)

    return out[0, :B], out[1, :B], out[2, :B]


# --------------------------------------------------------------------------- #
# Parameters (PyTorch nn.Linear layout: weight (out, in), bias (out,))
# --------------------------------------------------------------------------- #
def init_params(key, state_dim, action_dim, n_latent_var):
    """Deterministic PyTorch-style init (uniform +/- 1/sqrt(fan_in))."""
    def linear(k, fan_in, fan_out):
        kw, kb = jax.random.split(k)
        bound = 1.0 / jnp.sqrt(jnp.float32(fan_in))
        w = jax.random.uniform(kw, (fan_out, fan_in), jnp.float32, -bound, bound)
        b = jax.random.uniform(kb, (fan_out,), jnp.float32, -bound, bound)
        return w, b

    keys = jax.random.split(key, 6)
    w1a, b1a = linear(keys[0], state_dim, n_latent_var)
    w2a, b2a = linear(keys[1], n_latent_var, n_latent_var)
    w3a, b3a = linear(keys[2], n_latent_var, action_dim)
    w1v, b1v = linear(keys[3], state_dim, n_latent_var)
    w2v, b2v = linear(keys[4], n_latent_var, n_latent_var)
    w3v, b3v = linear(keys[5], n_latent_var, 1)
    return dict(w1a=w1a, b1a=b1a, w2a=w2a, b2a=b2a, w3a=w3a, b3a=b3a,
                w1v=w1v, b1v=b1v, w2v=w2v, b2v=b2v, w3v=w3v, b3v=b3v)


def pack_params(p):
    """Fuse actor + critic params into 3 matmuls (see kernel docstring).

    Kept float32 everywhere: on v6e/v7x the fused weights + state tile could be
    cast to bfloat16 (keep preferred_element_type=f32) for 2x less VMEM/HBM
    traffic, but f32 keeps the 1e-5 check valid and serves v5e (no bf16 VPU).
    """
    H = p["w1a"].shape[0]
    A = p["w3a"].shape[0]
    f32 = jnp.float32
    zhh = jnp.zeros((H, H), f32)
    w1 = jnp.concatenate([p["w1a"], p["w1v"]], axis=0)                   # (2H, S)
    b1 = jnp.concatenate([p["b1a"], p["b1v"]], axis=0)[:, None]          # (2H, 1)
    w2 = jnp.block([[p["w2a"], zhh], [zhh, p["w2v"]]])                   # (2H, 2H)
    b2 = jnp.concatenate([p["b2a"], p["b2v"]], axis=0)[:, None]          # (2H, 1)
    w3 = jnp.concatenate([
        jnp.concatenate([p["w3a"], jnp.zeros((A, H), f32)], axis=1),
        jnp.concatenate([jnp.zeros((1, H), f32), p["w3v"]], axis=1),
    ], axis=0)                                                           # (A+1, 2H)
    b3 = jnp.concatenate([p["b3a"], p["b3v"]], axis=0)[:, None]          # (A+1, 1)
    return w1, b1, w2, b2, w3, b3


# --------------------------------------------------------------------------- #
# Pure-JAX reference + demo
# --------------------------------------------------------------------------- #
def _reference(state, action, p):
    h = jnp.tanh(state @ p["w1a"].T + p["b1a"])
    h = jnp.tanh(h @ p["w2a"].T + p["b2a"])
    logits = h @ p["w3a"].T + p["b3a"]
    probs = jax.nn.softmax(logits, axis=-1)
    logp_all = jnp.log(probs)
    logp = jnp.take_along_axis(logp_all, action[:, None], axis=-1)[:, 0]
    ent = -jnp.sum(probs * logp_all, axis=-1)
    hv = jnp.tanh(state @ p["w1v"].T + p["b1v"])
    hv = jnp.tanh(hv @ p["w2v"].T + p["b2v"])
    val = (hv @ p["w3v"].T + p["b3v"])[:, 0]
    return logp, val, ent


if __name__ == "__main__":
    # small-but-representative PPO shapes; B=200 exercises both the batch grid
    # (2 tiles of 128) and the padding path.
    B, STATE_DIM, ACTION_DIM, N_LATENT = 200, 32, 8, 32

    key = jax.random.PRNGKey(0)
    k_params, k_state, k_action = jax.random.split(key, 3)

    params = init_params(k_params, STATE_DIM, ACTION_DIM, N_LATENT)
    packed = pack_params(params)
    state = jax.random.normal(k_state, (B, STATE_DIM), jnp.float32)
    action = jax.random.randint(k_action, (B,), 0, ACTION_DIM, jnp.int32)

    logp, value, ent = actor_critic_evaluate(state, action, packed)
    jax.block_until_ready((logp, value, ent))

    # sanity check against pure-JAX reference
    r_logp, r_value, r_ent = _reference(state, action, params)
    assert jnp.allclose(logp, r_logp, atol=1e-5), "logprob mismatch"
    assert jnp.allclose(value, r_value, atol=1e-5), "value mismatch"
    assert jnp.allclose(ent, r_ent, atol=1e-5), "entropy mismatch"

    print("KERNEL_OK")
</pallas_src>

<mosaic_0001>
module attributes {stable_mosaic.version = 11 : i64} {
  func.func @_actor_critic_kernel(%arg0: i32, %arg1: memref<32x128xf32, #tpu.memory_space<vmem>>, %arg2: memref<1x128xi32, #tpu.memory_space<vmem>>, %arg3: memref<64x32xf32, #tpu.memory_space<vmem>>, %arg4: memref<64x1xf32, #tpu.memory_space<vmem>>, %arg5: memref<64x64xf32, #tpu.memory_space<vmem>>, %arg6: memref<64x1xf32, #tpu.memory_space<vmem>>, %arg7: memref<9x64xf32, #tpu.memory_space<vmem>>, %arg8: memref<9x1xf32, #tpu.memory_space<vmem>>, %arg9: memref<3x128xf32, #tpu.memory_space<vmem>>) attributes {dimension_semantics = [#tpu.dimension_semantics<parallel>], iteration_bounds = array<i64: 2>, scalar_prefetch = 0 : i64, scratch_operands = 0 : i64, tpu.core_type = #tpu.core_type<tc>, window_params = [{transform_indices = @transform_0, window_bounds = array<i64: 32, 128>}, {transform_indices = @transform_1, window_bounds = array<i64: 1, 128>}, {pipeline_mode = #tpu.pipeline_mode<synchronous>, transform_indices = @transform_2, window_bounds = array<i64: 64, 32>}, {pipeline_mode = #tpu.pipeline_mode<synchronous>, transform_indices = @transform_3, window_bounds = array<i64: 64, 1>}, {pipeline_mode = #tpu.pipeline_mode<synchronous>, transform_indices = @transform_4, window_bounds = array<i64: 64, 64>}, {pipeline_mode = #tpu.pipeline_mode<synchronous>, transform_indices = @transform_5, window_bounds = array<i64: 64, 1>}, {pipeline_mode = #tpu.pipeline_mode<synchronous>, transform_indices = @transform_6, window_bounds = array<i64: 9, 64>}, {pipeline_mode = #tpu.pipeline_mode<synchronous>, transform_indices = @transform_7, window_bounds = array<i64: 9, 1>}, {transform_indices = @transform_8, window_bounds = array<i64: 3, 128>}]} {
    %c0 = arith.constant 0 : index
    %c0_0 = arith.constant 0 : index
    %0 = vector.load %arg1[%c0, %c0_0] : memref<32x128xf32, #tpu.memory_space<vmem>>, vector<32x128xf32>
    %c0_1 = arith.constant 0 : index
    %c0_2 = arith.constant 0 : index
    %1 = vector.load %arg3[%c0_1, %c0_2] : memref<64x32xf32, #tpu.memory_space<vmem>>, vector<64x32xf32>
    %cst = arith.constant dense<0.000000e+00> : vector<64x128xf32>
    %2 = tpu.matmul %1, %0, %cst {dimension_numbers = #tpu.dot_dimension_numbers<[1], [0], [0], [1], [0, 0, 1, 1], [], []>} : vector<64x32xf32>, vector<32x128xf32>, vector<64x128xf32> -> vector<64x128xf32>
    %c0_3 = arith.constant 0 : index
    %c0_4 = arith.constant 0 : index
    %3 = vector.load %arg4[%c0_3, %c0_4] : memref<64x1xf32, #tpu.memory_space<vmem>>, vector<64x1xf32>
    %4 = vector.broadcast %3 : vector<64x1xf32> to vector<64x128xf32>
    %5 = arith.addf %2, %4 : vector<64x128xf32>
    %6 = math.tanh %5 : vector<64x128xf32>
    %c0_5 = arith.constant 0 : index
    %c0_6 = arith.constant 0 : index
    %7 = vector.load %arg5[%c0_5, %c0_6] : memref<64x64xf32, #tpu.memory_space<vmem>>, vector<64x64xf32>
    %cst_7 = arith.constant dense<0.000000e+00> : vector<64x128xf32>
    %8 = tpu.matmul %7, %6, %cst_7 {dimension_numbers = #tpu.dot_dimension_numbers<[1], [0], [0], [1], [0, 0, 1, 1], [], []>} : vector<64x64xf32>, vector<64x128xf32>, vector<64x128xf32> -> vector<64x128xf32>
    %c0_8 = arith.constant 0 : index
    %c0_9 = arith.constant 0 : index
    %9 = vector.load %arg6[%c0_8, %c0_9] : memref<64x1xf32, #tpu.memory_space<vmem>>, vector<64x1xf32>
    %10 = vector.broadcast %9 : vector<64x1xf32> to vector<64x128xf32>
    %11 = arith.addf %8, %10 : vector<64x128xf32>
    %12 = math.tanh %11 : vector<64x128xf32>
    %c0_10 = arith.constant 0 : index
    %c0_11 = arith.constant 0 : index
    %13 = vector.load %arg7[%c0_10, %c0_11] : memref<9x64xf32, #tpu.memory_space<vmem>>, vector<9x64xf32>
    %cst_12 = arith.constant dense<0.000000e+00> : vector<9x128xf32>
    %14 = tpu.matmul %13, %12, %cst_12 {dimension_numbers = #tpu.dot_dimension_numbers<[1], [0], [0], [1], [0, 0, 1, 1], [], []>} : vector<9x64xf32>, vector<64x128xf32>, vector<9x128xf32> -> vector<9x128xf32>
    %c0_13 = arith.constant 0 : index
    %c0_14 = arith.constant 0 : index
    %15 = vector.load %arg8[%c0_13, %c0_14] : memref<9x1xf32, #tpu.memory_space<vmem>>, vector<9x1xf32>
    %16 = vector.broadcast %15 : vector<9x1xf32> to vector<9x128xf32>
    %17 = arith.addf %14, %16 : vector<9x128xf32>
    %18 = vector.extract_strided_slice %17 {offsets = [0, 0], sizes = [8, 128], strides = [1, 1]} : vector<9x128xf32> to vector<8x128xf32>
    %19 = vector.extract_strided_slice %17 {offsets = [8, 0], sizes = [1, 128], strides = [1, 1]} : vector<9x128xf32> to vector<1x128xf32>
    %cst_15 = arith.constant dense<0xFF800000> : vector<128xf32>
    %20 = vector.multi_reduction <maximumf>, %18, %cst_15 [0] : vector<8x128xf32> to vector<128xf32>
    %21 = vector.shape_cast %20 : vector<128xf32> to vector<1x128xf32>
    %22 = vector.broadcast %21 : vector<1x128xf32> to vector<8x128xf32>
    %23 = arith.subf %18, %22 : vector<8x128xf32>
    %24 = math.exp %23 : vector<8x128xf32>
    %cst_16 = arith.constant dense<0.000000e+00> : vector<128xf32>
    %25 = vector.multi_reduction <add>, %24, %cst_16 [0] : vector<8x128xf32> to vector<128xf32>
    %26 = vector.shape_cast %25 : vector<128xf32> to vector<1x128xf32>
    %27 = tpu.reciprocal %26 : vector<1x128xf32> -> vector<1x128xf32>
    %28 = vector.broadcast %27 : vector<1x128xf32> to vector<8x128xf32>
    %29 = arith.mulf %24, %28 : vector<8x128xf32>
    %30 = math.log %26 : vector<1x128xf32>
    %31 = vector.broadcast %30 : vector<1x128xf32> to vector<8x128xf32>
    %32 = arith.subf %23, %31 : vector<8x128xf32>
    %c0_17 = arith.constant 0 : index
    %c0_18 = arith.constant 0 : index
    %33 = vector.load %arg2[%c0_17, %c0_18] : memref<1x128xi32, #tpu.memory_space<vmem>>, vector<1x128xi32>
    %34 = tpu.iota {dimensions = array<i32: 0>} : vector<8x128xi32>
    %35 = vector.broadcast %33 : vector<1x128xi32> to vector<8x128xi32>
    %36 = arith.cmpi eq, %34, %35 : vector<8x128xi32>
    %37 = arith.extui %36 : vector<8x128xi1> to vector<8x128xi32>
    %38 = arith.sitofp %37 : vector<8x128xi32> to vector<8x128xf32>
    %39 = arith.mulf %38, %32 : vector<8x128xf32>
    %cst_19 = arith.constant dense<0.000000e+00> : vector<128xf32>
    %40 = vector.multi_reduction <add>, %39, %cst_19 [0] : vector<8x128xf32> to vector<128xf32>
    %41 = vector.shape_cast %40 : vector<128xf32> to vector<1x128xf32>
    %42 = arith.mulf %29, %32 : vector<8x128xf32>
    %cst_20 = arith.constant dense<0.000000e+00> : vector<128xf32>
    %43 = vector.multi_reduction <add>, %42, %cst_20 [0] : vector<8x128xf32> to vector<128xf32>
    %44 = vector.shape_cast %43 : vector<128xf32> to vector<1x128xf32>
    %cst_21 = arith.constant 0.000000e+00 : f32
    %45 = vector.broadcast %cst_21 : f32 to vector<1x128xf32>
    %46 = arith.subf %45, %44 : vector<1x128xf32>
    %47 = tpu.concatenate %41, %19, %46 in 0 : vector<1x128xf32>, vector<1x128xf32>, vector<1x128xf32> -> vector<3x128xf32>
    %c0_22 = arith.constant 0 : index
    %c0_23 = arith.constant 0 : index
    %48 = vector.load %arg9[%c0_22, %c0_23] : memref<3x128xf32, #tpu.memory_space<vmem>>, vector<3x128xf32>
    tpu.vector_store %arg9[%c0_22, %c0_23], %47 {strides = array<i32>} : memref<3x128xf32, #tpu.memory_space<vmem>>, vector<3x128xf32>,
    return
  }
  func.func @transform_0(%arg0: i32) -> (i32, i32) {
    %c0_i32 = arith.constant 0 : i32
    %c0_i32_0 = arith.constant 0 : i32
    return %c0_i32, %arg0 : i32, i32
  }
  func.func @transform_1(%arg0: i32) -> (i32, i32) {
    %c0_i32 = arith.constant 0 : i32
    %c0_i32_0 = arith.constant 0 : i32
    return %c0_i32, %arg0 : i32, i32
  }
  func.func @transform_2(%arg0: i32) -> (i32, i32) {
    %c0_i32 = arith.constant 0 : i32
    %c0_i32_0 = arith.constant 0 : i32
    %c0_i32_1 = arith.constant 0 : i32
    return %c0_i32, %c0_i32_0 : i32, i32
  }
  func.func @transform_3(%arg0: i32) -> (i32, i32) {
    %c0_i32 = arith.constant 0 : i32
    %c0_i32_0 = arith.constant 0 : i32
    %c0_i32_1 = arith.constant 0 : i32
    return %c0_i32, %c0_i32_0 : i32, i32
  }
  func.func @transform_4(%arg0: i32) -> (i32, i32) {
    %c0_i32 = arith.constant 0 : i32
    %c0_i32_0 = arith.constant 0 : i32
    %c0_i32_1 = arith.constant 0 : i32
    return %c0_i32, %c0_i32_0 : i32, i32
  }
  func.func @transform_5(%arg0: i32) -> (i32, i32) {
    %c0_i32 = arith.constant 0 : i32
    %c0_i32_0 = arith.constant 0 : i32
    %c0_i32_1 = arith.constant 0 : i32
    return %c0_i32, %c0_i32_0 : i32, i32
  }
  func.func @transform_6(%arg0: i32) -> (i32, i32) {
    %c0_i32 = arith.constant 0 : i32
    %c0_i32_0 = arith.constant 0 : i32
    %c0_i32_1 = arith.constant 0 : i32
    return %c0_i32, %c0_i32_0 : i32, i32
  }
  func.func @transform_7(%arg0: i32) -> (i32, i32) {
    %c0_i32 = arith.constant 0 : i32
    %c0_i32_0 = arith.constant 0 : i32
    %c0_i32_1 = arith.constant 0 : i32
    return %c0_i32, %c0_i32_0 : i32, i32
  }
  func.func @transform_8(%arg0: i32) -> (i32, i32) {
    %c0_i32 = arith.constant 0 : i32
    %c0_i32_0 = arith.constant 0 : i32
    return %c0_i32, %arg0 : i32, i32
  }
}

</mosaic_0001>

<llo_original>
// kernel: tpu_custom_call.1
$region0: #{tpu_custom_call.1}
  #allocation0 [shape = 'u32[]', space=smem, size = 0x4, offset = 0x4, fixed_abs, tag = 'smem constant byte address 0x4 - core index']
  #allocation1 [shape = 'u32[72,128]{1,0:T(1,128)}', space=vmem, size = 0x9000, scoped, tag = 'internal scratch']
  %s0 = inlined_call_operand.vmem [shape: f32[32,256], index: 0, kind: input, shape index: {}]
  %s1 = inlined_call_operand.vmem [shape: s32[1,256], index: 1, kind: input, shape index: {}]
  %s2 = inlined_call_operand.vmem [shape: f32[64,32], index: 2, kind: input, shape index: {}]
  %s3 = inlined_call_operand.vmem [shape: f32[64,1], index: 3, kind: input, shape index: {}]
  %s4 = inlined_call_operand.vmem [shape: f32[64,64], index: 4, kind: input, shape index: {}]
  %s5 = inlined_call_operand.vmem [shape: f32[64,1], index: 5, kind: input, shape index: {}]
  %s6 = inlined_call_operand.vmem [shape: f32[9,64], index: 6, kind: input, shape index: {}]
  %s7 = inlined_call_operand.vmem [shape: f32[9,1], index: 7, kind: input, shape index: {}]
  %s8 = inlined_call_operand.hbm [shape: f32[3,256], index: 8, kind: output, shape index: {}]
  %s9 = sld [smem:[#allocation0]]
  $region103: #{tpu_custom_call.1} parent=0
    _
  %s11 = ssub.s32 1, %s9
  %s12 = scalar_select 0, %s11, %s9
  $region1: #{tpu_custom_call.1} parent=0
    #allocation2 [shape = 'u8[32768]{0}', space=vmem, size = 0x8000, scoped, tag = 'input window, operand 0']
    #allocation3 [shape = 'u8[4096]{0}', space=vmem, size = 0x1000, scoped, tag = 'output window, operand 0']
    #allocation4 [shape = 's32[2]{0}', space=sflag, size = 0x8, scoped, tag = 'scoped memory for tpu_custom_call.1']
    %13 = vsyncpa [#allocation4], 0
    %s14 = scalar_lea.sflag [#allocation4], 1
    %15 = vsyncpa %s14, 0
    loop: start=0, step=1, limit=4
    $region2: #{tpu_custom_call.1} parent=1 // loop_pre_header
      _
    $region3: #{tpu_custom_call.1} parent=1 // loop_header
      %s17 = sphi 0, %s21
      %p18 = scmp.ge.s32.totalorder %s17, 4
      %s27 = sphi 0, %s29
      %s30 = sphi 0, %s27
      %s31 = sphi 0, %s30
      %s47 = sphi 0, %s31
      %s53 = sphi 0, %s55
      %s56 = sphi 0, %s53
      %s57 = sphi 0, %s56
      %s73 = sphi 0, %s57
      %s77 = sphi 0, %s77
      %s79 = sphi 0, %s77
      %s80 = sphi 0, %s79
      %s94 = sphi 0, %s80
      %s98 = sphi 0, %s98
      %s100 = sphi 0, %s98
      %s101 = sphi 0, %s100
      %s115 = sphi 0, %s101
      %s119 = sphi 0, %s119
      %s121 = sphi 0, %s119
      %s122 = sphi 0, %s121
      %s136 = sphi 0, %s122
      %s140 = sphi 0, %s140
      %s142 = sphi 0, %s140
      %s143 = sphi 0, %s142
      %s157 = sphi 0, %s143
      %s161 = sphi 0, %s161
      %s163 = sphi 0, %s161
      %s164 = sphi 0, %s163
      %s178 = sphi 0, %s164
      %s182 = sphi 0, %s182
      %s184 = sphi 0, %s182
      %s185 = sphi 0, %s184
      %s199 = sphi 0, %s185
      %s205 = sphi 0, %s207
      %s208 = sphi 0, %s205
      %s209 = sphi 0, %s208
      %s225 = sphi 0, %s209
    $region4: #{tpu_custom_call.1} parent=1 // loop_header_branch
      %20 = sbr.rel (%p18) target = $region8
    $region5: #{tpu_custom_call.1} parent=1 // loop_body
      %s22 = ssub.s32 %s17, 1
      %s23 = ssub.s32 %s17, 2
      %s24 = sadd.s32 %s17, 1
      %s25 = ssub.s32 %s17, %s24
      %p26 = scmp.eq.s32.totalorder %s25, 0
      %s28 = sadd.s32 %s27, 1
      %s29 = scalar_select %p26, %s27, %s28
      %p32 = pneg %p26
      %p33 = scmp.eq.s32.totalorder %s17, 1
      %p34 = por %p32, %p33
      %p35 = scmp.ne.s32.totalorder %s27, %s30
      %p36 = scmp.eq.s32.totalorder %s17, 0
      %p37 = por %p35, %p36
      %p38 = scmp.ne.s32.totalorder %s27, %s30
      %p39 = scmp.eq.s32.totalorder %s22, 1
      %p40 = por %p38, %p39
      %p41 = scmp.ne.s32.totalorder %s30, %s31
      %p42 = scmp.eq.s32.totalorder %s22, 0
      %p43 = por %p41, %p42
      %p44 = scmp.ne.s32.totalorder %s30, %s31
      %p45 = scmp.eq.s32.totalorder %s23, 1
      %p46 = por %p44, %p45
      %p48 = scmp.ne.s32.totalorder %s31, %s47
      %p49 = scmp.eq.s32.totalorder %s23, 0
      %p50 = por %p48, %p49
      %s51 = ssub.s32 %s17, %s24
      %p52 = scmp.eq.s32.totalorder %s51, 0
      %s54 = sadd.s32 %s53, 1
      %s55 = scalar_select %p52, %s53, %s54
      %p58 = pneg %p52
      %p59 = scmp.eq.s32.totalorder %s17, 1
      %p60 = por %p58, %p59
      %p61 = scmp.ne.s32.totalorder %s53, %s56
      %p62 = scmp.eq.s32.totalorder %s17, 0
      %p63 = por %p61, %p62
      %p64 = scmp.ne.s32.totalorder %s53, %s56
      %p65 = scmp.eq.s32.totalorder %s22, 1
      %p66 = por %p64, %p65
      %p67 = scmp.ne.s32.totalorder %s56, %s57
      %p68 = scmp.eq.s32.totalorder %s22, 0
      %p69 = por %p67, %p68
      %p70 = scmp.ne.s32.totalorder %s56, %s57
      %p71 = scmp.eq.s32.totalorder %s23, 1
      %p72 = por %p70, %p71
      %p74 = scmp.ne.s32.totalorder %s57, %s73
      %p75 = scmp.eq.s32.totalorder %s23, 0
      %p76 = por %p74, %p75
      %s78 = sadd.s32 %s77, 1
      %p81 = scmp.eq.s32.totalorder %s17, 1
      %p82 = scmp.ne.s32.totalorder %s77, %s79
      %p83 = scmp.eq.s32.totalorder %s17, 0
      %p84 = por %p82, %p83
      %p85 = scmp.ne.s32.totalorder %s77, %s79
      %p86 = scmp.eq.s32.totalorder %s22, 1
      %p87 = por %p85, %p86
      %p88 = scmp.ne.s32.totalorder %s79, %s80
      %p89 = scmp.eq.s32.totalorder %s22, 0
      %p90 = por %p88, %p89
      %p91 = scmp.ne.s32.totalorder %s79, %s80
      %p92 = scmp.eq.s32.totalorder %s23, 1
      %p93 = por %p91, %p92
      %p95 = scmp.ne.s32.totalorder %s80, %s94
      %p96 = scmp.eq.s32.totalorder %s23, 0
      %p97 = por %p95, %p96
      %s99 = sadd.s32 %s98, 1
      %p102 = scmp.eq.s32.totalorder %s17, 1
      %p103 = scmp.ne.s32.totalorder %s98, %s100
      %p104 = scmp.eq.s32.totalorder %s17, 0
      %p105 = por %p103, %p104
      %p106 = scmp.ne.s32.totalorder %s98, %s100
      %p107 = scmp.eq.s32.totalorder %s22, 1
      %p108 = por %p106, %p107
      %p109 = scmp.ne.s32.totalorder %s100, %s101
      %p110 = scmp.eq.s32.totalorder %s22, 0
      %p111 = por %p109, %p110
      %p112 = scmp.ne.s32.totalorder %s100, %s101
      %p113 = scmp.eq.s32.totalorder %s23, 1
      %p114 = por %p112, %p113
      %p116 = scmp.ne.s32.totalorder %s101, %s115
      %p117 = scmp.eq.s32.totalorder %s23, 0
      %p118 = por %p116, %p117
      %s120 = sadd.s32 %s119, 1
      %p123 = scmp.eq.s32.totalorder %s17, 1
      %p124 = scmp.ne.s32.totalorder %s119, %s121
      %p125 = scmp.eq.s32.totalorder %s17, 0
      %p126 = por %p124, %p125
      %p127 = scmp.ne.s32.totalorder %s119, %s121
      %p128 = scmp.eq.s32.totalorder %s22, 1
      %p129 = por %p127, %p128
      %p130 = scmp.ne.s32.totalorder %s121, %s122
      %p131 = scmp.eq.s32.totalorder %s22, 0
      %p132 = por %p130, %p131
      %p133 = scmp.ne.s32.totalorder %s121, %s122
      %p134 = scmp.eq.s32.totalorder %s23, 1
      %p135 = por %p133, %p134
      %p137 = scmp.ne.s32.totalorder %s122, %s136
      %p138 = scmp.eq.s32.totalorder %s23, 0
      %p139 = por %p137, %p138
      %s141 = sadd.s32 %s140, 1
      %p144 = scmp.eq.s32.totalorder %s17, 1
      %p145 = scmp.ne.s32.totalorder %s140, %s142
      %p146 = scmp.eq.s32.totalorder %s17, 0
      %p147 = por %p145, %p146
      %p148 = scmp.ne.s32.totalorder %s140, %s142
      %p149 = scmp.eq.s32.totalorder %s22, 1
      %p150 = por %p148, %p149
      %p151 = scmp.ne.s32.totalorder %s142, %s143
      %p152 = scmp.eq.s32.totalorder %s22, 0
      %p153 = por %p151, %p152
      %p154 = scmp.ne.s32.totalorder %s142, %s143
      %p155 = scmp.eq.s32.totalorder %s23, 1
      %p156 = por %p154, %p155
      %p158 = scmp.ne.s32.totalorder %s143, %s157
      %p159 = scmp.eq.s32.totalorder %s23, 0
      %p160 = por %p158, %p159
      %s162 = sadd.s32 %s161, 1
      %p165 = scmp.eq.s32.totalorder %s17, 1
      %p166 = scmp.ne.s32.totalorder %s161, %s163
      %p167 = scmp.eq.s32.totalorder %s17, 0
      %p168 = por %p166, %p167
      %p169 = scmp.ne.s32.totalorder %s161, %s163
      %p170 = scmp.eq.s32.totalorder %s22, 1
      %p171 = por %p169, %p170
      %p172 = scmp.ne.s32.totalorder %s163, %s164
      %p173 = scmp.eq.s32.totalorder %s22, 0
      %p174 = por %p172, %p173
      %p175 = scmp.ne.s32.totalorder %s163, %s164
      %p176 = scmp.eq.s32.totalorder %s23, 1
      %p177 = por %p175, %p176
      %p179 = scmp.ne.s32.totalorder %s164, %s178
      %p180 = scmp.eq.s32.totalorder %s23, 0
      %p181 = por %p179, %p180
      %s183 = sadd.s32 %s182, 1
      %p186 = scmp.eq.s32.totalorder %s17, 1
      %p187 = scmp.ne.s32.totalorder %s182, %s184
      %p188 = scmp.eq.s32.totalorder %s17, 0
      %p189 = por %p187, %p188
      %p190 = scmp.ne.s32.totalorder %s182, %s184
      %p191 = scmp.eq.s32.totalorder %s22, 1
      %p192 = por %p190, %p191
      %p193 = scmp.ne.s32.totalorder %s184, %s185
      %p194 = scmp.eq.s32.totalorder %s22, 0
      %p195 = por %p193, %p194
      %p196 = scmp.ne.s32.totalorder %s184, %s185
      %p197 = scmp.eq.s32.totalorder %s23, 1
      %p198 = por %p196, %p197
      %p200 = scmp.ne.s32.totalorder %s185, %s199
      %p201 = scmp.eq.s32.totalorder %s23, 0
      %p202 = por %p200, %p201
      %s203 = ssub.s32 %s17, %s24
      %p204 = scmp.eq.s32.totalorder %s203, 0
      %s206 = sadd.s32 %s205, 1
      %s207 = scalar_select %p204, %s205, %s206
      %p210 = pneg %p204
      %p211 = scmp.eq.s32.totalorder %s17, 1
      %p212 = por %p210, %p211
      %p213 = scmp.ne.s32.totalorder %s205, %s208
      %p214 = scmp.eq.s32.totalorder %s17, 0
      %p215 = por %p213, %p214
      %p216 = scmp.ne.s32.totalorder %s205, %s208
      %p217 = scmp.eq.s32.totalorder %s22, 1
      %p218 = por %p216, %p217
      %p219 = scmp.ne.s32.totalorder %s208, %s209
      %p220 = scmp.eq.s32.totalorder %s22, 0
      %p221 = por %p219, %p220
      %p222 = scmp.ne.s32.totalorder %s208, %s209
      %p223 = scmp.eq.s32.totalorder %s23, 1
      %p224 = por %p222, %p223
      %p226 = scmp.ne.s32.totalorder %s209, %s225
      %p227 = scmp.eq.s32.totalorder %s23, 0
      %p228 = por %p226, %p227
      %p229 = scmp.le.s32.totalorder 1, %s17
      %p230 = scmp.lt.s32.totalorder %s17, 3
      %p231 = pnand %p229, %p230
      %p232 = pneg %p231
      // Predicated region
      $region9: #{tpu_custom_call.1} parent=5 // pred_check
        _
      $region10: #{tpu_custom_call.1} parent=5 // pred_check_branch
        %234 = sbr.rel (%p231) target = $region12
      $region11: #{tpu_custom_call.1} parent=5 // pred_region
        %s235 = ssub.s32 %s17, 1
        // Predicated region
        $region13: #{tpu_custom_call.1} parent=11 // pred_check
          %p236 = pneg %p90
        $region14: #{tpu_custom_call.1} parent=11 // pred_check_branch
          %238 = sbr.rel (%p236) target = $region16
        $region15: #{tpu_custom_call.1} parent=11 // pred_region
          _
        $region16: #{tpu_custom_call.1} parent=11 // pred_fallthru
          _
        // Predicated region
        $region17: #{tpu_custom_call.1} parent=11 // pred_check
          %p239 = pneg %p111
        $region18: #{tpu_custom_call.1} parent=11 // pred_check_branch
          %241 = sbr.rel (%p239) target = $region20
        $region19: #{tpu_custom_call.1} parent=11 // pred_region
          _
        $region20: #{tpu_custom_call.1} parent=11 // pred_fallthru
          _
        // Predicated region
        $region21: #{tpu_custom_call.1} parent=11 // pred_check
          %p242 = pneg %p132
        $region22: #{tpu_custom_call.1} parent=11 // pred_check_branch
          %244 = sbr.rel (%p242) target = $region24
        $region23: #{tpu_custom_call.1} parent=11 // pred_region
          _
        $region24: #{tpu_custom_call.1} parent=11 // pred_fallthru
          _
        // Predicated region
        $region25: #{tpu_custom_call.1} parent=11 // pred_check
          %p245 = pneg %p153
        $region26: #{tpu_custom_call.1} parent=11 // pred_check_branch
          %247 = sbr.rel (%p245) target = $region28
        $region27: #{tpu_custom_call.1} parent=11 // pred_region
          _
        $region28: #{tpu_custom_call.1} parent=11 // pred_fallthru
          _
        // Predicated region
        $region29: #{tpu_custom_call.1} parent=11 // pred_check
          %p248 = pneg %p174
        $region30: #{tpu_custom_call.1} parent=11 // pred_check_branch
          %250 = sbr.rel (%p248) target = $region32
        $region31: #{tpu_custom_call.1} parent=11 // pred_region
          _
        $region32: #{tpu_custom_call.1} parent=11 // pred_fallthru
          _
        // Predicated region
        $region33: #{tpu_custom_call.1} parent=11 // pred_check
          %p251 = pneg %p195
        $region34: #{tpu_custom_call.1} parent=11 // pred_check_branch
          %253 = sbr.rel (%p251) target = $region36
        $region35: #{tpu_custom_call.1} parent=11 // pred_region
          _
        $region36: #{tpu_custom_call.1} parent=11 // pred_fallthru
          _
      $region12: #{tpu_custom_call.1} parent=5 // pred_fallthru
        _
      %p254 = scmp.lt.s32.totalorder %s17, 2
      // Predicated region
      $region37: #{tpu_custom_call.1} parent=5 // pred_check
        %p255 = pneg %p254
      $region38: #{tpu_custom_call.1} parent=5 // pred_check_branch
        %257 = sbr.rel (%p255) target = $region40
      $region39: #{tpu_custom_call.1} parent=5 // pred_region
        // Predicated region
        $region41: #{tpu_custom_call.1} parent=39 // pred_check
          %p258 = pneg %p37
        $region42: #{tpu_custom_call.1} parent=39 // pred_check_branch
          %260 = sbr.rel (%p258) target = $region44
        $region43: #{tpu_custom_call.1} parent=39 // pred_region
          %s261 = sand.u32 %s27, 1
          %s262 = sand.u32 %s27, 1
          %s263 = smul.addr %s262, 32
          %s264 = scalar_lea.vmem [#allocation2], %s263
          %s265 = smul.addr %s17, 8
          %s266 = scalar_lea.vmem %s0, %s265
          // Predicated region
          $region45: #{tpu_custom_call.1} parent=43 // pred_check
            _
          $region46: #{tpu_custom_call.1} parent=43 // pred_check_branch
            %268 = sbr.rel (0) target = $region48
          $region47: #{tpu_custom_call.1} parent=43 // pred_region
            // Predicated region
            $region49: #{tpu_custom_call.1} parent=47 // pred_check
              _
            $region50: #{tpu_custom_call.1} parent=47 // pred_check_branch
              %270 = sbr.rel (0) target = $region52
            $region51: #{tpu_custom_call.1} parent=47 // pred_region
              // Predicated region
              $region64: #{tpu_custom_call.1} parent=51 // pred_check
                _
              $region65: #{tpu_custom_call.1} parent=51 // pred_check_branch
                %292 = sbr.rel (0) target = $region67
              $region66: #{tpu_custom_call.1} parent=51 // pred_region
                loop: start=0, step=1, limit=1
                $region68: #{tpu_custom_call.1} parent=66 // loop_pre_header
                  _
                $region69: #{tpu_custom_call.1} parent=66 // loop_header
                  %s294 = sphi 0, %s298
                  %p295 = scmp.ge.s32.totalorder %s294, 1
                  %s299 = sphi %s266, %s266
                  %s300 = sphi %s264, %s264
                $region70: #{tpu_custom_call.1} parent=66 // loop_header_branch
                  %297 = sbr.rel (%p295) target = $region74
                $region71: #{tpu_custom_call.1} parent=66 // loop_body
                  %v301 = vld [vmem:[%s299] sm:$0xff]
                  %302 = vst [vmem:[%s300] sm:$0xff] %v301
                  %v303 = vld [vmem:[%s299 + $0x10] sm:$0xff]
                  %304 = vst [vmem:[%s300 + $0x8] sm:$0xff] %v303
                  %v305 = vld [vmem:[%s299 + $0x20] sm:$0xff]
                  %306 = vst [vmem:[%s300 + $0x10] sm:$0xff] %v305
                  %v307 = vld [vmem:[%s299 + $0x30] sm:$0xff]
                  %308 = vst [vmem:[%s300 + $0x18] sm:$0xff] %v307
                $region72: #{tpu_custom_call.1} parent=66 // loop_footer
                  %s298 = sadd.s32 1, %s294
                $region73: #{tpu_custom_call.1} parent=66 // loop_footer_branch
                  %293 = sbr.rel target = $region69
                $region74: #{tpu_custom_call.1} parent=66 // loop_exit
                  _
              $region67: #{tpu_custom_call.1} parent=51 // pred_fallthru
                _
              // Predicated region
              $region75: #{tpu_custom_call.1} parent=51 // pred_check
                _
              $region76: #{tpu_custom_call.1} parent=51 // pred_check_branch
                %310 = sbr.rel target = $region78
              $region77: #{tpu_custom_call.1} parent=51 // pred_region
                _
              $region78: #{tpu_custom_call.1} parent=51 // pred_fallthru
                _
            $region52: #{tpu_custom_call.1} parent=47 // pred_fallthru
              _
            // Predicated region
            $region53: #{tpu_custom_call.1} parent=47 // pred_check
              _
            $region54: #{tpu_custom_call.1} parent=47 // pred_check_branch
              %272 = sbr.rel target = $region56
            $region55: #{tpu_custom_call.1} parent=47 // pred_region
              %s274 = ssub.s32 256, 1
              loop: start=0, step=1, limit=1
              $region57: #{tpu_custom_call.1} parent=55 // loop_pre_header
                _
              $region58: #{tpu_custom_call.1} parent=55 // loop_header
                %s276 = sphi 0, %s280
                %p277 = scmp.ge.s32.totalorder %s276, 1
                %s281 = sphi %s266, %s266
                %s282 = sphi %s264, %s264
              $region59: #{tpu_custom_call.1} parent=55 // loop_header_branch
                %279 = sbr.rel (%p277) target = $region63
              $region60: #{tpu_custom_call.1} parent=55 // loop_body
                %v283 = vld [vmem:[%s281] sm:%s274]
                %284 = vst [vmem:[%s282] sm:%s274] %v283
                %v285 = vld [vmem:[%s281 + $0x10] sm:%s274]
                %286 = vst [vmem:[%s282 + $0x8] sm:%s274] %v285
                %v287 = vld [vmem:[%s281 + $0x20] sm:%s274]
                %288 = vst [vmem:[%s282 + $0x10] sm:%s274] %v287
                %v289 = vld [vmem:[%s281 + $0x30] sm:%s274]
                %290 = vst [vmem:[%s282 + $0x18] sm:%s274] %v289
              $region61: #{tpu_custom_call.1} parent=55 // loop_footer
                %s280 = sadd.s32 1, %s276
              $region62: #{tpu_custom_call.1} parent=55 // loop_footer_branch
                %275 = sbr.rel target = $region58
              $region63: #{tpu_custom_call.1} parent=55 // loop_exit
                _
            $region56: #{tpu_custom_call.1} parent=47 // pred_fallthru
              _
          $region48: #{tpu_custom_call.1} parent=43 // pred_fallthru
            _
          %311 = vnop
        $region44: #{tpu_custom_call.1} parent=39 // pred_fallthru
          _
        // Predicated region
        $region79: #{tpu_custom_call.1} parent=39 // pred_check
          %p312 = pneg %p63
        $region80: #{tpu_custom_call.1} parent=39 // pred_check_branch
          %314 = sbr.rel (%p312) target = $region82
        $region81: #{tpu_custom_call.1} parent=39 // pred_region
          %p315 = scmp.lt.s32.totalorder %s17, 1
          %s316 = scalar_select %p315, %s17, 1
          %s317 = scalar_lea.vmem %s1, %s316
        $region82: #{tpu_custom_call.1} parent=39 // pred_fallthru
          _
      $region40: #{tpu_custom_call.1} parent=5 // pred_fallthru
        _
      %p318 = scmp.le.s32.totalorder 1, %s17
      %p319 = scmp.lt.s32.totalorder %s17, 3
      %p320 = pnand %p318, %p319
      %p321 = pneg %p320
      // Predicated region
      $region83: #{tpu_custom_call.1} parent=5 // pred_check
        _
      $region84: #{tpu_custom_call.1} parent=5 // pred_check_branch
        %323 = sbr.rel (%p320) target = $region86
      $region85: #{tpu_custom_call.1} parent=5 // pred_region
        %s324 = ssub.s32 %s17, 1
        %s325 = sand.u32 %s30, 1
        %s326 = sand.u32 %s30, 1
        %s327 = smul.addr %s326, 32
        %s328 = scalar_lea.vmem [#allocation2], %s327
        // Predicated region
        $region87: #{tpu_custom_call.1} parent=85 // pred_check
          %p329 = pneg %p43
        $region88: #{tpu_custom_call.1} parent=85 // pred_check_branch
          %331 = sbr.rel (%p329) target = $region90
        $region89: #{tpu_custom_call.1} parent=85 // pred_region
          _
        $region90: #{tpu_custom_call.1} parent=85 // pred_fallthru
          _
        %s332 = sand.u32 %s30, 1
        %s333 = sand.u32 %s30, 1
        %s334 = smul.addr %s333, 32
        %s335 = scalar_lea.vmem [#allocation2], %s334
        %p336 = pneg %p43
        %p337 = pneg %p40
        %p338 = scmp.lt.s32.totalorder %s22, 1
        %s339 = scalar_select %p338, %s22, 1
        %s340 = scalar_lea.vmem %s1, %s339
        %p341 = pneg %p69
        %p342 = pneg %p66
        %p343 = pneg %p90
        %p344 = pneg %p87
        %p345 = pneg %p111
        %p346 = pneg %p108
        %p347 = pneg %p132
        %p348 = pneg %p129
        %p349 = pneg %p153
        %p350 = pneg %p150
        %p351 = pneg %p174
        %p352 = pneg %p171
        %p353 = pneg %p195
        %p354 = pneg %p192
        %p355 = pneg %p221
        %p356 = pneg %p218
        %s357 = sand.u32 %s208, 1
        %s358 = scalar_lea.sflag [#allocation4], %s357
        %s359 = sand.u32 %s208, 1
        %s360 = smul.addr %s359, 4
        %s361 = scalar_lea.vmem [#allocation3], %s360
        %p362 = scmp.lt.s32.totalorder %s22, 1
        %s363 = scalar_select %p362, %s22, 1
        %s364 = scalar_lea.vmem %s1, %s363
        %v365 = vld [vmem:[%s328] sm:$0xff]
        %v366 = vld [vmem:[%s328 + $0x8] sm:$0xff]
        %v367 = vld [vmem:[%s328 + $0x10] sm:$0xff]
        %v368 = vld [vmem:[%s328 + $0x18] sm:$0xff]
        %v369 = vld [vmem:[%s2] sm:$0xff]
        %v370 = vld [vmem:[%s2 + $0x8] sm:$0xff]
        %v371 = vld [vmem:[%s2 + $0x10] sm:$0xff]
        %v372 = vld [vmem:[%s2 + $0x18] sm:$0xff]
        %v373 = vld [vmem:[%s2 + $0x20] sm:$0xff]
        %v374 = vld [vmem:[%s2 + $0x28] sm:$0xff]
        %v375 = vld [vmem:[%s2 + $0x30] sm:$0xff]
        %v376 = vld [vmem:[%s2 + $0x38] sm:$0xff]
        %v377 = vld [vmem:[%s3] sm:$0xff]
        %v378 = vld [vmem:[%s3 + $0x8] sm:$0xff]
        %v379 = vld [vmem:[%s3 + $0x10] sm:$0xff]
        %v380 = vld [vmem:[%s3 + $0x18] sm:$0xff]
        %v381 = vld [vmem:[%s3 + $0x20] sm:$0xff]
        %v382 = vld [vmem:[%s3 + $0x28] sm:$0xff]
        %v383 = vld [vmem:[%s3 + $0x30] sm:$0xff]
        %v384 = vld [vmem:[%s3 + $0x38] sm:$0xff]
        %386 = vset.pattern.permute.xlu0 0
        %387 = vperm.xlu0 %386, %v377
        %v388 = vpop.permute.xlu0 %387
        %391 = vset.pattern.permute.xlu0 0
        %392 = vperm.xlu0 %391, %v378
        %v393 = vpop.permute.xlu0 %392
        %396 = vset.pattern.permute.xlu0 0
        %397 = vperm.xlu0 %396, %v379
        %v398 = vpop.permute.xlu0 %397
        %401 = vset.pattern.permute.xlu0 0
        %402 = vperm.xlu0 %401, %v380
        %v403 = vpop.permute.xlu0 %402
        %406 = vset.pattern.permute.xlu0 0
        %407 = vperm.xlu0 %406, %v381
        %v408 = vpop.permute.xlu0 %407
        %411 = vset.pattern.permute.xlu0 0
        %412 = vperm.xlu0 %411, %v382
        %v413 = vpop.permute.xlu0 %412
        %416 = vset.pattern.permute.xlu0 0
        %417 = vperm.xlu0 %416, %v383
        %v418 = vpop.permute.xlu0 %417
        %421 = vset.pattern.permute.xlu0 0
        %422 = vperm.xlu0 %421, %v384
        %v423 = vpop.permute.xlu0 %422
        %vm425 = vcmask 261120
        %v427 = vsel %vm425, %v369, 0
        %v430 = vsel %vm425, %v370, 0
        %v433 = vsel %vm425, %v371, 0
        %v436 = vsel %vm425, %v372, 0
        %v439 = vsel %vm425, %v373, 0
        %v442 = vsel %vm425, %v374, 0
        %v445 = vsel %vm425, %v375, 0
        %v448 = vsel %vm425, %v376, 0
        %450 = vmatpush.msra.mxu0 0.0
        %451 = vmatpush.msra.mxu0 0.0
        %452 = vmatpush.msra.mxu0 0.0
        %453 = vmatpush.msra.mxu0 0.0
        %454 = vmatpush.msra.mxu0 0.0
        %455 = vmatpush.msra.mxu0 0.0
        %456 = vmatpush.msra.mxu0 0.0
        %457 = vmatpush.msra.mxu0 0.0
        %458 = vmatpush.msra.mxu0 0.0
        %459 = vmatpush.msra.mxu0 0.0
        %460 = vmatpush.msra.mxu0 0.0
        %461 = vmatpush.msra.mxu0 0.0
        %462 = vmatpush.msra.mxu0 %v368
        %463 = vmatpush.msra.mxu0 %v367
        %464 = vmatpush.msra.mxu0 %v366
        %465 = vmatpush.msra.mxu0 %v365
        %466 = vmatmul.f32.gmra.mxu0 %v427
        %v467 = vpop.f32.mrf.mxu0
        %v468 = vadd.f32 %v388, %v467
        %469 = vmatmul.f32.gmra.mxu0 %v430
        %v470 = vpop.f32.mrf.mxu0
        %v471 = vadd.f32 %v393, %v470
        %472 = vmatmul.f32.gmra.mxu0 %v433
        %v473 = vpop.f32.mrf.mxu0
        %v474 = vadd.f32 %v398, %v473
        %475 = vmatmul.f32.gmra.mxu0 %v436
        %v476 = vpop.f32.mrf.mxu0
        %v477 = vadd.f32 %v403, %v476
        %478 = vmatmul.f32.gmra.mxu0 %v439
        %v479 = vpop.f32.mrf.mxu0
        %v480 = vadd.f32 %v408, %v479
        %481 = vmatmul.f32.gmra.mxu0 %v442
        %v482 = vpop.f32.mrf.mxu0
        %v483 = vadd.f32 %v413, %v482
        %484 = vmatmul.f32.gmra.mxu0 %v445
        %v485 = vpop.f32.mrf.mxu0
        %v486 = vadd.f32 %v418, %v485
        %487 = vmatmul.f32.gmra.mxu0 %v448
        %v488 = vpop.f32.mrf.mxu0
        %v489 = vadd.f32 %v423, %v488
        %490 = vdwg.mxu0
        %v491 = vtanh.pop %v468
        %v492 = vtanh.pop %v471
        %v493 = vtanh.pop %v474
        %v494 = vtanh.pop %v477
        %v495 = vtanh.pop %v480
        %v496 = vtanh.pop %v483
        %v497 = vtanh.pop %v486
        %v498 = vtanh.pop %v489
        %v499 = vld [vmem:[%s4] sm:$0xff]
        %v500 = vld [vmem:[%s4 + $0x8] sm:$0xff]
        %v501 = vld [vmem:[%s4 + $0x10] sm:$0xff]
        %v502 = vld [vmem:[%s4 + $0x18] sm:$0xff]
        %v503 = vld [vmem:[%s4 + $0x20] sm:$0xff]
        %v504 = vld [vmem:[%s4 + $0x28] sm:$0xff]
        %v505 = vld [vmem:[%s4 + $0x30] sm:$0xff]
        %v506 = vld [vmem:[%s4 + $0x38] sm:$0xff]
        %v507 = vld [vmem:[%s5] sm:$0xff]
        %v508 = vld [vmem:[%s5 + $0x8] sm:$0xff]
        %v509 = vld [vmem:[%s5 + $0x10] sm:$0xff]
        %v510 = vld [vmem:[%s5 + $0x18] sm:$0xff]
        %v511 = vld [vmem:[%s5 + $0x20] sm:$0xff]
        %v512 = vld [vmem:[%s5 + $0x28] sm:$0xff]
        %v513 = vld [vmem:[%s5 + $0x30] sm:$0xff]
        %v514 = vld [vmem:[%s5 + $0x38] sm:$0xff]
        %516 = vset.pattern.permute.xlu0 0
        %517 = vperm.xlu0 %516, %v507
        %v518 = vpop.permute.xlu0 %517
        %521 = vset.pattern.permute.xlu0 0
        %522 = vperm.xlu0 %521, %v508
        %v523 = vpop.permute.xlu0 %522
        %526 = vset.pattern.permute.xlu0 0
        %527 = vperm.xlu0 %526, %v509
        %v528 = vpop.permute.xlu0 %527
        %531 = vset.pattern.permute.xlu0 0
        %532 = vperm.xlu0 %531, %v510
        %v533 = vpop.permute.xlu0 %532
        %536 = vset.pattern.permute.xlu0 0
        %537 = vperm.xlu0 %536, %v511
        %v538 = vpop.permute.xlu0 %537
        %541 = vset.pattern.permute.xlu0 0
        %542 = vperm.xlu0 %541, %v512
        %v543 = vpop.permute.xlu0 %542
        %546 = vset.pattern.permute.xlu0 0
        %547 = vperm.xlu0 %546, %v513
        %v548 = vpop.permute.xlu0 %547
        %551 = vset.pattern.permute.xlu0 0
        %552 = vperm.xlu0 %551, %v514
        %v553 = vpop.permute.xlu0 %552
        %vm555 = vcmask 523264
        %v557 = vsel %vm555, %v499, 0
        %v560 = vsel %vm555, %v500, 0
        %v563 = vsel %vm555, %v501, 0
        %v566 = vsel %vm555, %v502, 0
        %v569 = vsel %vm555, %v503, 0
        %v572 = vsel %vm555, %v504, 0
        %v575 = vsel %vm555, %v505, 0
        %v578 = vsel %vm555, %v506, 0
        %580 = vmatpush.msra.mxu0 0.0
        %581 = vmatpush.msra.mxu0 0.0
        %582 = vmatpush.msra.mxu0 0.0
        %583 = vmatpush.msra.mxu0 0.0
        %584 = vmatpush.msra.mxu0 0.0
        %585 = vmatpush.msra.mxu0 0.0
        %586 = vmatpush.msra.mxu0 0.0
        %587 = vmatpush.msra.mxu0 0.0
        %588 = vmatpush.msra.mxu0 %v498
        %589 = vmatpush.msra.mxu0 %v497
        %590 = vmatpush.msra.mxu0 %v496
        %591 = vmatpush.msra.mxu0 %v495
        %592 = vmatpush.msra.mxu0 %v494
        %593 = vmatpush.msra.mxu0 %v493
        %594 = vmatpush.msra.mxu0 %v492
        %595 = vmatpush.msra.mxu0 %v491
        %596 = vmatmul.f32.gmra.mxu0 %v557
        %v597 = vpop.f32.mrf.mxu0
        %v598 = vadd.f32 %v518, %v597
        %599 = vmatmul.f32.gmra.mxu0 %v560
        %v600 = vpop.f32.mrf.mxu0
        %v601 = vadd.f32 %v523, %v600
        %602 = vmatmul.f32.gmra.mxu0 %v563
        %v603 = vpop.f32.mrf.mxu0
        %v604 = vadd.f32 %v528, %v603
        %605 = vmatmul.f32.gmra.mxu0 %v566
        %v606 = vpop.f32.mrf.mxu0
        %v607 = vadd.f32 %v533, %v606
        %608 = vmatmul.f32.gmra.mxu0 %v569
        %v609 = vpop.f32.mrf.mxu0
        %v610 = vadd.f32 %v538, %v609
        %611 = vmatmul.f32.gmra.mxu0 %v572
        %v612 = vpop.f32.mrf.mxu0
        %v613 = vadd.f32 %v543, %v612
        %614 = vmatmul.f32.gmra.mxu0 %v575
        %v615 = vpop.f32.mrf.mxu0
        %v616 = vadd.f32 %v548, %v615
        %617 = vmatmul.f32.gmra.mxu0 %v578
        %v618 = vpop.f32.mrf.mxu0
        %v619 = vadd.f32 %v553, %v618
        %620 = vdwg.mxu0
        %v621 = vtanh.pop %v598
        %v622 = vtanh.pop %v601
        %v623 = vtanh.pop %v604
        %v624 = vtanh.pop %v607
        %v625 = vtanh.pop %v610
        %v626 = vtanh.pop %v613
        %v627 = vtanh.pop %v616
        %v628 = vtanh.pop %v619
        %v629 = vld [vmem:[%s6] sm:$0xff]
        %v630 = vld [vmem:[%s6 + $0x8] sm:$0x1]
        %v631 = vld [vmem:[%s7] sm:$0xff]
        %v632 = vld [vmem:[%s7 + $0x8] sm:$0x1]
        %634 = vset.pattern.permute.xlu0 0
        %635 = vperm.xlu0 %634, %v631
        %v636 = vpop.permute.xlu0 %635
        %639 = vset.pattern.permute.xlu0 0
        %640 = vperm.xlu0 %639, %v632
        %v641 = vpop.permute.xlu0 %640
        %v644 = vsel %vm555, %v629, 0
        %v647 = vsel %vm555, %v630, 0
        %649 = vmatpush.msra.mxu0 0.0
        %650 = vmatpush.msra.mxu0 0.0
        %651 = vmatpush.msra.mxu0 0.0
        %652 = vmatpush.msra.mxu0 0.0
        %653 = vmatpush.msra.mxu0 0.0
        %654 = vmatpush.msra.mxu0 0.0
        %655 = vmatpush.msra.mxu0 0.0
        %656 = vmatpush.msra.mxu0 0.0
        %657 = vmatpush.msra.mxu0 %v628
        %658 = vmatpush.msra.mxu0 %v627
        %659 = vmatpush.msra.mxu0 %v626
        %660 = vmatpush.msra.mxu0 %v625
        %661 = vmatpush.msra.mxu0 %v624
        %662 = vmatpush.msra.mxu0 %v623
        %663 = vmatpush.msra.mxu0 %v622
        %664 = vmatpush.msra.mxu0 %v621
        %665 = vmatmul.f32.gmra.mxu0 %v644
        %v666 = vpop.f32.mrf.mxu0
        %v667 = vadd.f32 %v636, %v666
        %668 = vmatmul.f32.gmra.mxu0 %v647
        %v669 = vpop.f32.mrf.mxu0
        %v670 = vadd.f32 %v641, %v669
        %671 = vdwg.mxu0
        %v672 = vrot.slane %v667, 4
        %v673 = vmax.f32 %v667, %v672
        %v674 = vrot.slane %v673, 2
        %v675 = vmax.f32 %v673, %v674
        %v676 = vrot.slane %v675, 1
        %v677 = vmax.f32 %v675, %v676
        %v678 = vsub.f32 %v667, %v677
        %v679 = vmul.f32 %v678, 1.442695
        %v680 = vpow.pop %v679
        %v681 = vrot.slane %v680, 4
        %v682 = vadd.f32 %v680, %v681
        %v683 = vrot.slane %v682, 2
        %v684 = vadd.f32 %v682, %v683
        %v685 = vrot.slane %v684, 1
        %v686 = vadd.f32 %v684, %v685
        %v687 = vrcp.pop %v686
        %v688 = vmul.f32 %v686, %v687
        %v689 = vsub.f32 1.0, %v688
        %v690 = vmul.f32 %v687, %v689
        %v691 = vadd.f32 %v687, %v690
        %vm692 = vweird.f32 %v686
        %vm693 = vweird.f32 %v687
        %vm694 = vmor %vm692, %vm693
        %v695 = vsel %vm694, %v687, %v691
        %v696 = vand.u32 2147483647, %v686
        %vm697 = vcmp.eq.f32.partialorder %v696, 8.507059e+37
        %v698 = vand.u32 %v686, 2147483648
        %v699 = vor.u32 1.1754944e-38, %v698
        %v700 = vsel %vm697, %v699, %v695
        %v701 = vmul.f32 %v680, %v700
        %v702 = vlog2.pop %v686
        %v703 = vmul.f32 %v702, 0.6931472
        %v704 = vsub.f32 %v678, %v703
        %v705 = vld [vmem:[%s364] sm:$0x1]
        %v706 = vlaneseq
        %v707 = vshrl.u32 %v706, 7
        %v708 = vperm.slane %v705, 0
        %vm709 = vcmp.eq.s32.totalorder %v707, %v708
        %v710 = vsel %vm709, 1, 0
        %v711 = vcvt.s32.f32 %v710
        %v712 = vmul.f32 %v711, %v704
        %v713 = vrot.slane %v712, 4
        %v714 = vadd.f32 %v712, %v713
        %v715 = vrot.slane %v714, 2
        %v716 = vadd.f32 %v714, %v715
        %v717 = vrot.slane %v716, 1
        %v718 = vadd.f32 %v716, %v717
        %v719 = vmul.f32 %v701, %v704
        %v720 = vrot.slane %v719, 4
        %v721 = vadd.f32 %v719, %v720
        %v722 = vrot.slane %v721, 2
        %v723 = vadd.f32 %v721, %v722
        %v724 = vrot.slane %v723, 1
        %v725 = vadd.f32 %v723, %v724
        %v726 = vsub.f32 0.0, %v725
        %v728 = vrot.slane %v670, 7
        %vm730 = vcmask 1040384
        %v731 = vsel %vm730, %v718, %v728
        %vm732 = vcmask 1041408
        %v733 = vsel %vm732, %v731, %v726
        %734 = vst [vmem:[%s361] sm:$0x7] %v733
        %s735 = sand.u32 %s208, 1
        %s736 = scalar_lea.sflag [#allocation4], %s735
        %s737 = sand.u32 %s208, 1
        %s738 = smul.addr %s737, 4
        %s739 = scalar_lea.vmem [#allocation3], %s738
        // Predicated region
        $region91: #{tpu_custom_call.1} parent=85 // pred_check
          %p740 = pneg %p218
        $region92: #{tpu_custom_call.1} parent=85 // pred_check_branch
          %742 = sbr.rel (%p740) target = $region94
        $region93: #{tpu_custom_call.1} parent=85 // pred_region
          %744 = vsyncadd %s736, 0
          %s745 = smul.addr %s22, 4
          %s746 = scalar_lea.hbm %s8, %s745
          %s748 = sshll.u32 %s739, 4
          %s749 = int_to_ptr.vmem [resolvable:$true] %s748
          %s750 = sshll.u32 %s746, 4
          %s751 = int_to_ptr.hbm [resolvable:$true] %s750
          %753 = dma.vmem_to_hbm [thread:$0]  %s749, 64, %s751, %s736
        $region94: #{tpu_custom_call.1} parent=85 // pred_fallthru
          _
      $region86: #{tpu_custom_call.1} parent=5 // pred_fallthru
        _
      %p754 = scmp.le.s32.totalorder 2, %s17
      // Predicated region
      $region95: #{tpu_custom_call.1} parent=5 // pred_check
        %p755 = pneg %p754
      $region96: #{tpu_custom_call.1} parent=5 // pred_check_branch
        %757 = sbr.rel (%p755) target = $region98
      $region97: #{tpu_custom_call.1} parent=5 // pred_region
        %s758 = ssub.s32 %s17, 2
        // Predicated region
        $region99: #{tpu_custom_call.1} parent=97 // pred_check
          %p759 = pneg %p224
        $region100: #{tpu_custom_call.1} parent=97 // pred_check_branch
          %761 = sbr.rel (%p759) target = $region102
        $region101: #{tpu_custom_call.1} parent=97 // pred_region
          %s762 = sand.u32 %s209, 1
          %s763 = scalar_lea.sflag [#allocation4], %s762
          %s764 = sand.u32 %s209, 1
          %s765 = smul.addr %s764, 4
          %s766 = scalar_lea.vmem [#allocation3], %s765
          %768 = dma.done %s763, 64
        $region102: #{tpu_custom_call.1} parent=97 // pred_fallthru
          _
      $region98: #{tpu_custom_call.1} parent=5 // pred_fallthru
        _
    $region6: #{tpu_custom_call.1} parent=1 // loop_footer
      %s21 = sadd.s32 1, %s17
    $region7: #{tpu_custom_call.1} parent=1 // loop_footer_branch
      %16 = sbr.rel target = $region3
    $region8: #{tpu_custom_call.1} parent=1 // loop_exit
      _
    %769 = vsyncpa [#allocation4], 1
    %s770 = scalar_lea.sflag [#allocation4], 1
    %771 = vsyncpa %s770, 1

</llo_original>
